<compile_context>
chip_gen: v7x
topology: tpu7x:2x2x1
jax: 0.10.0
libtpu: 0.0.40
codegen_flags: <defaults>
</compile_context>

<pallas_src>
import functools
import math

import numpy as np
import jax
import jax.numpy as jnp
from jax import lax
from jax.experimental import pallas as pl
from jax.experimental.pallas import tpu as pltpu


# Conservative per-step VMEM budget used to pick tile sizes: leaves headroom
# inside v7x's 64 MiB physical VMEM (and is far below v5e/v6e's 128 MiB).
_VMEM_BUDGET = 36 * 1024 * 1024
_MASK_BIAS = -1e30   # finite large-negative mask bias (NaN-safe)


# ----------------------------- fused QKV projection ---------------------------

def _qkv_proj_kernel(x_ref, w_ref, b_ref, q_ref, k_ref, v_ref, *, hidden):
    # bf16 MXU operands, f32 accumulation, f32 bias add; outputs stored bf16.
    y = jnp.dot(x_ref[...], w_ref[...], preferred_element_type=jnp.float32)
    y = y + b_ref[...]
    q_ref[...] = y[:, :hidden].astype(q_ref.dtype)
    k_ref[...] = y[:, hidden:2 * hidden].astype(k_ref.dtype)
    v_ref[...] = y[:, 2 * hidden:].astype(v_ref.dtype)


def _proj_step_bytes(tr, hidden):
    resident = 2 * hidden * 3 * hidden + 4 * 3 * hidden            # bf16 weight + f32 bias
    streamed = 2 * (tr * hidden * 2 + 3 * tr * hidden * 2)         # x + 3 outs, double-buffered
    interm = tr * 3 * hidden * 4 * 2                               # f32 accumulator + cast copies
    return resident + streamed + interm


def _choose_row_tile(n, hidden, budget=_VMEM_BUDGET):
    cands = [n] + [c for c in (2048, 1024, 512, 256, 128, 64, 32, 16, 8)
                   if c < n and n % c == 0]
    for c in cands:
        if _proj_step_bytes(c, hidden) <= budget:
            return c
    return cands[-1]


def _qkv_projection(x, w_qkv_t, b_qkv, hidden):
    n, din = x.shape
    tr = _choose_row_tile(n, hidden)
    grid = (n // tr,)

    step = _proj_step_bytes(tr, hidden)
    vmem_limit = int(min(max(2 * step, 32 * 1024 * 1024), 56 * 1024 * 1024))

    out_sds = jax.ShapeDtypeStruct((n, hidden), jnp.bfloat16)

    def row_spec():
        return pl.BlockSpec((tr, hidden), lambda i: (i, 0))

    return pl.pallas_call(
        functools.partial(_qkv_proj_kernel, hidden=hidden),
        out_shape=(out_sds, out_sds, out_sds),
        grid=grid,
        in_specs=[
            pl.BlockSpec((tr, din), lambda i: (i, 0)),
            pl.BlockSpec((din, 3 * hidden), lambda i: (0, 0)),   # resident bf16 weight
            pl.BlockSpec((1, 3 * hidden), lambda i: (0, 0)),     # resident f32 bias
        ],
        out_specs=(row_spec(), row_spec(), row_spec()),
        compiler_params=pltpu.CompilerParams(
            dimension_semantics=("parallel",),
            vmem_limit_bytes=vmem_limit,
        ),
    )(x, w_qkv_t, b_qkv)


# --------------------------- banded local attention ---------------------------

def _local_attn_kernel(band_ref, q_ref, kp_ref, kc_ref, kn_ref,
                       vp_ref, vc_ref, vn_ref, o_ref, *,
                       tq, nq, num_heads, head_dim):
    j = pl.program_id(1)
    hidden = num_heads * head_dim

    # Band part of the mask is grid-invariant and resident (band_ref); only the
    # in-sequence boundary check depends on j (first / last query tile): the
    # prev-tile columns are invalid on tile 0, the next-tile columns on the
    # last tile (their BlockSpecs are clamped, so contents are irrelevant).
    col = lax.broadcasted_iota(jnp.int32, (1, 3 * tq), 1)
    oob = ((j == 0) & (col < tq)) | ((j == nq - 1) & (col >= 2 * tq))
    bias = band_ref[...] + jnp.where(oob, jnp.float32(_MASK_BIAS), jnp.float32(0.0))

    # (tq, H) / (3tq, H) bf16 blocks -> per-head views.
    qh = q_ref[...].reshape(tq, num_heads, head_dim)
    kw = jnp.concatenate([kp_ref[...], kc_ref[...], kn_ref[...]], axis=0)
    vw = jnp.concatenate([vp_ref[...], vc_ref[...], vn_ref[...]], axis=0)
    kh = kw.reshape(3 * tq, num_heads, head_dim)
    vh = vw.reshape(3 * tq, num_heads, head_dim)

    # One batched MXU matmul over all heads (bf16 operands, f32 accumulation).
    scores = jnp.einsum('qnd,knd->nqk', qh, kh,
                        preferred_element_type=jnp.float32)
    scores = scores + bias[None]

    # f32 softmax (v5e has no bf16 VPU/EUP); approx reciprocal on the EUP slot.
    m = jnp.max(scores, axis=-1, keepdims=True)
    p = jnp.exp(scores - m)
    denom = jnp.sum(p, axis=-1, keepdims=True)
    probs = p * pl.reciprocal(denom, approx=True)

    ctx = jnp.einsum('nqk,knd->qnd', probs.astype(jnp.bfloat16), vh,
                     preferred_element_type=jnp.float32)        # (tq, nh, hd)
    o_ref[...] = ctx.reshape(tq, hidden)                        # lane-dense store


def _attn_step_bytes(tq, hidden, num_heads):
    streamed = 2 * (7 * tq * hidden * 2 + tq * hidden * 4)      # 7 bf16 in + 1 f32 out, dbl-buf
    resident = tq * 3 * tq * 4                                  # band bias
    interm = num_heads * tq * 3 * tq * 14                       # ~3 f32 score temps + bf16 probs
    return streamed + resident + interm


def _choose_q_tile(seq_len, w, hidden, num_heads, budget=_VMEM_BUDGET):
    # need tq >= w (unless a single tile) so {j-1, j, j+1} covers [q-w, q+w]
    cands = sorted(
        {c for c in (8, 16, 32, 64, 128, 256, 512, 1024)
         if c < seq_len and seq_len % c == 0 and c >= w} | {seq_len},
        reverse=True)
    for c in cands:
        if _attn_step_bytes(c, hidden, num_heads) <= budget:
            return c
    return cands[-1]


def _local_attention(q, k, v, band_bias, *, num_heads, tq):
    batch, seq_len, hidden = q.shape
    head_dim = hidden // num_heads
    nq = seq_len // tq

    def kv_spec(delta):
        if delta < 0:
            return pl.BlockSpec((None, tq, hidden),
                                lambda b, j: (b, jnp.maximum(j - 1, 0), 0))
        if delta > 0:
            return pl.BlockSpec((None, tq, hidden),
                                lambda b, j: (b, jnp.minimum(j + 1, nq - 1), 0))
        return pl.BlockSpec((None, tq, hidden), lambda b, j: (b, j, 0))

    step = _attn_step_bytes(tq, hidden, num_heads)
    vmem_limit = int(min(max(2 * step, 32 * 1024 * 1024), 56 * 1024 * 1024))

    kernel = functools.partial(_local_attn_kernel, tq=tq, nq=nq,
                               num_heads=num_heads, head_dim=head_dim)

    return pl.pallas_call(
        kernel,
        out_shape=jax.ShapeDtypeStruct((batch, seq_len, hidden), jnp.float32),
        grid=(batch, nq),
        in_specs=[
            pl.BlockSpec((tq, 3 * tq), lambda b, j: (0, 0)),     # resident band mask
            kv_spec(0),                                          # q (current tile)
            kv_spec(-1), kv_spec(0), kv_spec(+1),                # k prev / cur / next
            kv_spec(-1), kv_spec(0), kv_spec(+1),                # v prev / cur / next
        ],
        out_specs=pl.BlockSpec((None, tq, hidden), lambda b, j: (b, j, 0)),
        compiler_params=pltpu.CompilerParams(
            dimension_semantics=("parallel", "parallel"),
            vmem_limit_bytes=vmem_limit,
        ),
    )(band_bias, q, k, k, k, v, v, v)


# --------------------------------- wrapper ------------------------------------

def local_self_attention(val, wq, bq, wk, bk, wv, bv, *, window_size, num_heads):
    """val: (seq_len, batch, hidden) f32 -> (seq_len, batch, hidden) f32."""
    s, b, hidden = val.shape
    assert hidden % num_heads == 0
    head_dim = hidden // num_heads
    w = window_size // 2
    assert w > 0 and s % (2 * w) == 0, \
        "seq_len must be a multiple of 2*(window_size//2)"
    scale = 1.0 / math.sqrt(head_dim)

    # Fold the 1/sqrt(head_dim) query scale into Wq/bq, fuse the Q/K/V weights
    # and pre-cast to bf16 (MXU-native operands on v5e/v6e/v7x).
    w_qkv_t = jnp.concatenate(
        [jnp.transpose(wq).astype(jnp.float32) * scale,
         jnp.transpose(wk).astype(jnp.float32),
         jnp.transpose(wv).astype(jnp.float32)], axis=1).astype(jnp.bfloat16)
    b_qkv = jnp.concatenate(
        [bq.astype(jnp.float32) * scale,
         bk.astype(jnp.float32),
         bv.astype(jnp.float32)]).reshape(1, 3 * hidden)

    # One transpose to (B, S, H) so batch never sits on the sublane axis inside
    # the kernels: every block is a lane/sublane-dense (tq, H) slab and batch
    # becomes a leading parallel grid axis.
    xb = jnp.transpose(val, (1, 0, 2)).astype(jnp.bfloat16)        # (B, S, H)
    q, k, v = _qkv_projection(xb.reshape(b * s, hidden), w_qkv_t, b_qkv, hidden)
    q = q.reshape(b, s, hidden)
    k = k.reshape(b, s, hidden)
    v = v.reshape(b, s, hidden)

    tq = _choose_q_tile(s, w, hidden, num_heads)

    # Grid-invariant band mask (|q_pos - k_pos| <= w over the 3-tile window),
    # computed once on the host; boundary validity is handled in-kernel.
    iq = np.arange(tq)[:, None]
    ik = np.arange(3 * tq)[None, :]
    band = np.abs((iq + tq) - ik) <= w
    band_bias = jnp.asarray(np.where(band, 0.0, _MASK_BIAS), dtype=jnp.float32)

    out = _local_attention(q, k, v, band_bias, num_heads=num_heads, tq=tq)
    return jnp.transpose(out, (1, 0, 2))        # back to (S, B, H), float32


# ------------------------------ dense reference --------------------------------

def _reference_local_self_attention(val, wq, bq, wk, bk, wv, bv, *,
                                    window_size, num_heads):
    s, b, h = val.shape
    hd = h // num_heads
    w = window_size // 2
    scale = 1.0 / math.sqrt(hd)
    x = val.astype(jnp.float32)
    q = (jnp.einsum("sbh,oh->sbo", x, wq) + bq) * scale
    k = jnp.einsum("sbh,oh->sbo", x, wk) + bk
    v = jnp.einsum("sbh,oh->sbo", x, wv) + bv

    def split(t):
        return t.reshape(s, b, num_heads, hd).transpose(1, 2, 0, 3)

    qh, kh, vh = split(q), split(k), split(v)
    scores = jnp.einsum("bnqd,bnkd->bnqk", qh, kh)
    qi = jnp.arange(s)[:, None]
    kj = jnp.arange(s)[None, :]
    band = jnp.abs(qi - kj) <= w
    scores = jnp.where(band[None, None], scores, -jnp.inf)
    probs = jax.nn.softmax(scores, axis=-1)
    out = jnp.einsum("bnqk,bnkd->bnqd", probs, vh)
    return out.transpose(2, 0, 1, 3).reshape(s, b, h)


# ------------------------------ deterministic init -----------------------------

def _init_linear(key, din, dout):
    kw, kb = jax.random.split(key)
    bound = 1.0 / math.sqrt(din)
    w = jax.random.uniform(kw, (dout, din), jnp.float32, -bound, bound)
    b = jax.random.uniform(kb, (dout,), jnp.float32, -bound, bound)
    return w, b


if __name__ == "__main__":
    def _check(seq_len, batch, hidden, num_heads, window_size, seed):
        key = jax.random.PRNGKey(seed)
        k_val, k_q, k_k, k_v = jax.random.split(key, 4)
        val = jax.random.normal(k_val, (seq_len, batch, hidden), jnp.float32)
        wq, bq = _init_linear(k_q, hidden, hidden)
        wk, bk = _init_linear(k_k, hidden, hidden)
        wv, bv = _init_linear(k_v, hidden, hidden)

        out = local_self_attention(
            val, wq, bq, wk, bk, wv, bv,
            window_size=window_size, num_heads=num_heads)
        out = jax.block_until_ready(out)

        assert out.shape == (seq_len, batch, hidden), out.shape
        assert out.dtype == jnp.float32
        assert bool(jnp.all(jnp.isfinite(out)))

        ref = _reference_local_self_attention(
            val, wq, bq, wk, bk, wv, bv,
            window_size=window_size, num_heads=num_heads)
        ref = jax.block_until_ready(ref)
        max_err = float(jnp.max(jnp.abs(out - ref)))
        mean_err = float(jnp.mean(jnp.abs(out - ref)))
        # bf16 MXU operands => slightly looser tolerance than pure-f32
        assert max_err < 5e-2 and mean_err < 1e-2, (max_err, mean_err)

    # small shape consistent with the module (head_dim=8, window_overlap=4)
    _check(seq_len=16, batch=2, hidden=64, num_heads=8, window_size=8, seed=0)
    # multi-tile path (nq > 1): exercises boundary masking & clamped windows
    _check(seq_len=1024, batch=1, hidden=64, num_heads=4, window_size=256, seed=1)

    print("KERNEL_OK")
</pallas_src>

<mosaic_0001>
module attributes {stable_mosaic.version = 11 : i64} {
  func.func @_qkv_proj_kernel(%arg0: i32, %arg1: memref<32x64xbf16, #tpu.memory_space<vmem>>, %arg2: memref<64x192xbf16, #tpu.memory_space<vmem>>, %arg3: memref<1x192xf32, #tpu.memory_space<vmem>>, %arg4: memref<32x64xbf16, #tpu.memory_space<vmem>>, %arg5: memref<32x64xbf16, #tpu.memory_space<vmem>>, %arg6: memref<32x64xbf16, #tpu.memory_space<vmem>>) attributes {dimension_semantics = [#tpu.dimension_semantics<parallel>], iteration_bounds = array<i64: 1>, scalar_prefetch = 0 : i64, scratch_operands = 0 : i64, tpu.core_type = #tpu.core_type<tc>, window_params = [{transform_indices = @transform_0, window_bounds = array<i64: 32, 64>}, {pipeline_mode = #tpu.pipeline_mode<synchronous>, transform_indices = @transform_1, window_bounds = array<i64: 64, 192>}, {pipeline_mode = #tpu.pipeline_mode<synchronous>, transform_indices = @transform_2, window_bounds = array<i64: 1, 192>}, {transform_indices = @transform_3, window_bounds = array<i64: 32, 64>}, {transform_indices = @transform_4, window_bounds = array<i64: 32, 64>}, {transform_indices = @transform_5, window_bounds = array<i64: 32, 64>}]} {
    %c0 = arith.constant 0 : index
    %c0_0 = arith.constant 0 : index
    %0 = vector.load %arg1[%c0, %c0_0] : memref<32x64xbf16, #tpu.memory_space<vmem>>, vector<32x64xbf16>
    %c0_1 = arith.constant 0 : index
    %c0_2 = arith.constant 0 : index
    %1 = vector.load %arg2[%c0_1, %c0_2] : memref<64x192xbf16, #tpu.memory_space<vmem>>, vector<64x192xbf16>
    %cst = arith.constant dense<0.000000e+00> : vector<32x192xf32>
    %2 = tpu.matmul %0, %1, %cst {dimension_numbers = #tpu.dot_dimension_numbers<[1], [0], [0], [1], [0, 0, 1, 1], [], []>} : vector<32x64xbf16>, vector<64x192xbf16>, vector<32x192xf32> -> vector<32x192xf32>
    %c0_3 = arith.constant 0 : index
    %c0_4 = arith.constant 0 : index
    %3 = vector.load %arg3[%c0_3, %c0_4] : memref<1x192xf32, #tpu.memory_space<vmem>>, vector<1x192xf32>
    %4 = vector.broadcast %3 : vector<1x192xf32> to vector<32x192xf32>
    %5 = arith.addf %2, %4 : vector<32x192xf32>
    %6 = vector.extract_strided_slice %5 {offsets = [0, 0], sizes = [32, 64], strides = [1, 1]} : vector<32x192xf32> to vector<32x64xf32>
    %7 = arith.truncf %6 : vector<32x64xf32> to vector<32x64xbf16>
    %c0_5 = arith.constant 0 : index
    %c0_6 = arith.constant 0 : index
    %8 = vector.load %arg4[%c0_5, %c0_6] : memref<32x64xbf16, #tpu.memory_space<vmem>>, vector<32x64xbf16>
    tpu.vector_store %arg4[%c0_5, %c0_6], %7 {strides = array<i32>} : memref<32x64xbf16, #tpu.memory_space<vmem>>, vector<32x64xbf16>,
    %9 = vector.extract_strided_slice %5 {offsets = [0, 64], sizes = [32, 64], strides = [1, 1]} : vector<32x192xf32> to vector<32x64xf32>
    %10 = arith.truncf %9 : vector<32x64xf32> to vector<32x64xbf16>
    %c0_7 = arith.constant 0 : index
    %c0_8 = arith.constant 0 : index
    %11 = vector.load %arg5[%c0_7, %c0_8] : memref<32x64xbf16, #tpu.memory_space<vmem>>, vector<32x64xbf16>
    tpu.vector_store %arg5[%c0_7, %c0_8], %10 {strides = array<i32>} : memref<32x64xbf16, #tpu.memory_space<vmem>>, vector<32x64xbf16>,
    %12 = vector.extract_strided_slice %5 {offsets = [0, 128], sizes = [32, 64], strides = [1, 1]} : vector<32x192xf32> to vector<32x64xf32>
    %13 = arith.truncf %12 : vector<32x64xf32> to vector<32x64xbf16>
    %c0_9 = arith.constant 0 : index
    %c0_10 = arith.constant 0 : index
    %14 = vector.load %arg6[%c0_9, %c0_10] : memref<32x64xbf16, #tpu.memory_space<vmem>>, vector<32x64xbf16>
    tpu.vector_store %arg6[%c0_9, %c0_10], %13 {strides = array<i32>} : memref<32x64xbf16, #tpu.memory_space<vmem>>, vector<32x64xbf16>,
    return
  }
  func.func @transform_0(%arg0: i32) -> (i32, i32) {
    %c0_i32 = arith.constant 0 : i32
    %c0_i32_0 = arith.constant 0 : i32
    return %arg0, %c0_i32 : i32, i32
  }
  func.func @transform_1(%arg0: i32) -> (i32, i32) {
    %c0_i32 = arith.constant 0 : i32
    %c0_i32_0 = arith.constant 0 : i32
    %c0_i32_1 = arith.constant 0 : i32
    return %c0_i32, %c0_i32_0 : i32, i32
  }
  func.func @transform_2(%arg0: i32) -> (i32, i32) {
    %c0_i32 = arith.constant 0 : i32
    %c0_i32_0 = arith.constant 0 : i32
    %c0_i32_1 = arith.constant 0 : i32
    return %c0_i32, %c0_i32_0 : i32, i32
  }
  func.func @transform_3(%arg0: i32) -> (i32, i32) {
    %c0_i32 = arith.constant 0 : i32
    %c0_i32_0 = arith.constant 0 : i32
    return %arg0, %c0_i32 : i32, i32
  }
  func.func @transform_4(%arg0: i32) -> (i32, i32) {
    %c0_i32 = arith.constant 0 : i32
    %c0_i32_0 = arith.constant 0 : i32
    return %arg0, %c0_i32 : i32, i32
  }
  func.func @transform_5(%arg0: i32) -> (i32, i32) {
    %c0_i32 = arith.constant 0 : i32
    %c0_i32_0 = arith.constant 0 : i32
    return %arg0, %c0_i32 : i32, i32
  }
}

</mosaic_0001>

<llo_original>
// kernel: tpu_custom_call.1
$region0: #{tpu_custom_call.1}
  #allocation0 [shape = 'u32[]', space=smem, size = 0x4, offset = 0x4, fixed_abs, tag = 'smem constant byte address 0x4 - core index']
  #allocation1 [shape = 'u32[144,128]{1,0:T(1,128)}', space=vmem, size = 0x12000, scoped, tag = 'internal scratch']
  %s0 = inlined_call_operand.hbm [shape: bf16[32,64], index: 0, kind: input, shape index: {}]
  %s1 = inlined_call_operand.hbm [shape: bf16[64,192], index: 1, kind: input, shape index: {}]
  %s2 = inlined_call_operand.vmem [shape: f32[1,192], index: 2, kind: input, shape index: {}]
  %s3 = inlined_call_operand.hbm [shape: bf16[32,64], index: 3, kind: output, shape index: {0}]
  %s4 = inlined_call_operand.hbm [shape: bf16[32,64], index: 4, kind: output, shape index: {1}]
  %s5 = inlined_call_operand.hbm [shape: bf16[32,64], index: 5, kind: output, shape index: {2}]
  %6 = xla_tuple %s3, %s4, %s5
  %s7 = sld [smem:[#allocation0]]
  $region46: #{tpu_custom_call.1} parent=0
    _
  %s9 = ssub.s32 1, %s7
  %s10 = scalar_select 0, %s9, %s7
  $region1: #{tpu_custom_call.1} parent=0
    #allocation2 [shape = 'u8[8192]{0}', space=vmem, size = 0x2000, scoped, tag = 'input window, operand 0, single buffered']
    #allocation3 [shape = 's32[1]{0}', space=sflag, size = 0x4, scoped, tag = 'scoped memory for tpu_custom_call.1']
    #allocation4 [shape = 's32[1]{0}', space=sflag, size = 0x4, scoped, tag = 'scoped memory for tpu_custom_call.1']
    #allocation5 [shape = 'u8[32768]{0}', space=vmem, size = 0x8000, scoped, tag = 'input window, operand 1, single buffered']
    #allocation6 [shape = 's32[1]{0}', space=sflag, size = 0x4, scoped, tag = 'scoped memory for tpu_custom_call.1']
    #allocation7 [shape = 'u8[8192]{0}', space=vmem, size = 0x2000, scoped, tag = 'output window, operand 0, single buffered']
    #allocation8 [shape = 'u8[8192]{0}', space=vmem, size = 0x2000, scoped, tag = 'output window, operand 1, single buffered']
    #allocation9 [shape = 's32[1]{0}', space=sflag, size = 0x4, scoped, tag = 'scoped memory for tpu_custom_call.1']
    #allocation10 [shape = 'u8[8192]{0}', space=vmem, size = 0x2000, scoped, tag = 'output window, operand 2, single buffered']
    %11 = vsyncpa [#allocation3], 0
    %12 = vsyncpa [#allocation6], 0
    %13 = vsyncpa [#allocation4], 0
    %14 = vsyncpa [#allocation9], 0
    // Predicated region
    $region2: #{tpu_custom_call.1} parent=1 // pred_check
      _
    $region3: #{tpu_custom_call.1} parent=1 // pred_check_branch
      %16 = sbr.rel (0) target = $region5
    $region4: #{tpu_custom_call.1} parent=1 // pred_region
      %s18 = ssub.s32 256, 256
      %19 = vsyncadd [#allocation3], %s18
      %s20 = sshll.u32 [#allocation2], 4
      %s21 = int_to_ptr.vmem [resolvable:$true] %s20
      %26 = dma.hbm_to_vmem [thread:$0]  %s0, 256, %s21, [#allocation3], 64, 64, 4
    $region5: #{tpu_custom_call.1} parent=1 // pred_fallthru
      _
    // Predicated region
    $region6: #{tpu_custom_call.1} parent=1 // pred_check
      _
    $region7: #{tpu_custom_call.1} parent=1 // pred_check_branch
      %28 = sbr.rel (0) target = $region9
    $region8: #{tpu_custom_call.1} parent=1 // pred_region
      %s30 = ssub.s32 1024, 1024
      %31 = vsyncadd [#allocation6], %s30
      %s32 = sshll.u32 [#allocation5], 4
      %s33 = int_to_ptr.vmem [resolvable:$true] %s32
      %38 = dma.hbm_to_vmem [thread:$0]  %s1, 1024, %s33, [#allocation6], 128, 128, 8
    $region9: #{tpu_custom_call.1} parent=1 // pred_fallthru
      _
    // Predicated region
    $region10: #{tpu_custom_call.1} parent=1 // pred_check
      _
    $region11: #{tpu_custom_call.1} parent=1 // pred_check_branch
      %40 = sbr.rel (0) target = $region13
    $region12: #{tpu_custom_call.1} parent=1 // pred_region
      _
    $region13: #{tpu_custom_call.1} parent=1 // pred_fallthru
      _
    // Predicated region
    $region14: #{tpu_custom_call.1} parent=1 // pred_check
      _
    $region15: #{tpu_custom_call.1} parent=1 // pred_check_branch
      %42 = sbr.rel (0) target = $region17
    $region16: #{tpu_custom_call.1} parent=1 // pred_region
      %43 = dma.done [#allocation3], 256
    $region17: #{tpu_custom_call.1} parent=1 // pred_fallthru
      _
    // Predicated region
    $region18: #{tpu_custom_call.1} parent=1 // pred_check
      _
    $region19: #{tpu_custom_call.1} parent=1 // pred_check_branch
      %45 = sbr.rel (0) target = $region21
    $region20: #{tpu_custom_call.1} parent=1 // pred_region
      %46 = dma.done [#allocation6], 1024
    $region21: #{tpu_custom_call.1} parent=1 // pred_fallthru
      _
    %v48 = vld [vmem:[#allocation2] sm:$0xf]
    %v49 = vld [vmem:[#allocation2 + $0x4] sm:$0xf]
    %v50 = vld [vmem:[#allocation2 + $0x8] sm:$0xf]
    %v51 = vld [vmem:[#allocation2 + $0xc] sm:$0xf]
    %v52 = vld [vmem:[#allocation5] sm:$0xff]
    %v53 = vld [vmem:[#allocation5 + $0x8] sm:$0xff]
    %v54 = vld [vmem:[#allocation5 + $0x10] sm:$0xff]
    %v55 = vld [vmem:[#allocation5 + $0x18] sm:$0xff]
    %v56 = vld [vmem:[#allocation5 + $0x20] sm:$0xff]
    %v57 = vld [vmem:[#allocation5 + $0x28] sm:$0xff]
    %v58 = vld [vmem:[#allocation5 + $0x30] sm:$0xff]
    %v59 = vld [vmem:[#allocation5 + $0x38] sm:$0xff]
    %v60 = vld [vmem:[%s2] sm:$0x3]
    %v62 = vlaneseq
    %v63 = vshrl.u32 %v62, 7
    %v64 = vsub.s32 0, %v63
    %v65 = vrot.slane %v60, %v64
    %v66 = vlaneseq
    %v67 = vshrl.u32 %v66, 7
    %v68 = vsub.s32 1, %v67
    %v69 = vrot.slane %v60, %v68
    %v76 = vunpack.c.l.b16 %v48
    %v77 = vunpack.c.l.b16 %v49
    %v78 = vunpack.c.l.b16 %v50
    %v79 = vunpack.c.l.b16 %v51
    %v80 = vpack.c.b16 %v77, %v76
    %v81 = vpack.c.b16 %v79, %v78
    %v90 = vunpack.c.l.b16 %v52
    %v91 = vunpack.c.h.b16 %v52
    %v92 = vunpack.c.l.b16 %v53
    %v93 = vunpack.c.h.b16 %v53
    %v94 = vunpack.c.l.b16 %v54
    %v95 = vunpack.c.h.b16 %v54
    %v96 = vunpack.c.l.b16 %v55
    %v97 = vunpack.c.h.b16 %v55
    %v98 = vunpack.c.l.b16 %v56
    %v99 = vunpack.c.h.b16 %v56
    %v100 = vunpack.c.l.b16 %v57
    %v101 = vunpack.c.h.b16 %v57
    %v102 = vunpack.c.l.b16 %v58
    %v103 = vunpack.c.h.b16 %v58
    %v104 = vunpack.c.l.b16 %v59
    %v105 = vunpack.c.h.b16 %v59
    %v106 = vpack.c.b16 %v92, %v90
    %v107 = vpack.c.b16 %v93, %v91
    %v108 = vpack.c.b16 %v96, %v94
    %v109 = vpack.c.b16 %v97, %v95
    %v110 = vpack.c.b16 %v100, %v98
    %v111 = vpack.c.b16 %v101, %v99
    %v112 = vpack.c.b16 %v104, %v102
    %v113 = vpack.c.b16 %v105, %v103
    %vm122 = vcmask 523264
    %v124 = vsel %vm122, %v80, 0
    %v127 = vsel %vm122, %v81, 0
    %129 = vmatprep.subr.bf16.mxu0 %v107
    %130 = vmatpush1.bf16.msra.mxu0 %v106
    %131 = vmatprep.subr.bf16.mxu0 %v109
    %132 = vmatpush1.bf16.msra.mxu0 %v108
    %133 = vmatprep.subr.bf16.mxu0 %v111
    %134 = vmatpush1.bf16.msra.mxu0 %v110
    %135 = vmatprep.subr.bf16.mxu0 %v113
    %136 = vmatpush1.bf16.msra.mxu0 %v112
    %137 = vmatprep.subr.bf16.mxu0 0
    %138 = vmatpush1.bf16.msra.mxu0 0
    %139 = vmatprep.subr.bf16.mxu0 0
    %140 = vmatpush1.bf16.msra.mxu0 0
    %141 = vmatprep.subr.bf16.mxu0 0
    %142 = vmatpush1.bf16.msra.mxu0 0
    %143 = vmatprep.subr.bf16.mxu0 0
    %144 = vmatpush1.bf16.msra.mxu0 0
    %145 = vmatprep.subr.bf16.mxu0 0
    %146 = vmatpush1.bf16.msra.mxu0 0
    %147 = vmatprep.subr.bf16.mxu0 0
    %148 = vmatpush1.bf16.msra.mxu0 0
    %149 = vmatprep.subr.bf16.mxu0 0
    %150 = vmatpush1.bf16.msra.mxu0 0
    %151 = vmatprep.subr.bf16.mxu0 0
    %152 = vmatpush1.bf16.msra.mxu0 0
    %153 = vmatprep.subr.bf16.mxu0 0
    %154 = vmatpush1.bf16.msra.mxu0 0
    %155 = vmatprep.subr.bf16.mxu0 0
    %156 = vmatpush1.bf16.msra.mxu0 0
    %157 = vmatprep.subr.bf16.mxu0 0
    %158 = vmatpush1.bf16.msra.mxu0 0
    %159 = vmatprep.subr.bf16.mxu0 0
    %160 = vmatpush1.bf16.msra.mxu0 0
    %161 = vmatprep.mubr.bf16.mxu0 0
    %162 = vmatmul.mubr.bf16.gmra.mrb[0].mxu0 %v124
    %v163 = vpop.f32.mrb[0].mxu0
    %v164 = vadd.f32 %v65, %v163
    %v165 = vpop.f32.mrb[0].mxu0
    %v166 = vadd.f32 %v69, %v165
    %v167 = vpop.f32.mrb[0].mxu0
    %v168 = vadd.f32 %v65, %v167
    %v169 = vpop.f32.mrb[0].mxu0
    %v170 = vadd.f32 %v69, %v169
    %171 = vmatprep.mubr.bf16.mxu0 0
    %172 = vmatmul.mubr.bf16.gmra.mrb[0].mxu0 %v127
    %v173 = vpop.f32.mrb[0].mxu0
    %v174 = vadd.f32 %v65, %v173
    %v175 = vpop.f32.mrb[0].mxu0
    %v176 = vadd.f32 %v69, %v175
    %v177 = vpop.f32.mrb[0].mxu0
    %v178 = vadd.f32 %v65, %v177
    %v179 = vpop.f32.mrb[0].mxu0
    %v180 = vadd.f32 %v69, %v179
    %181 = vdwg.mxu0
    %v182 = vpack.c.bf16 %v168, %v164
    %v183 = vpack.c.bf16 %v178, %v174
    %v186 = vunpack.c.l.b16 %v182
    %v187 = vunpack.c.h.b16 %v182
    %v188 = vunpack.c.l.b16 %v183
    %v189 = vunpack.c.h.b16 %v183
    %v190 = vpack.c.b16 %v186, %v186
    %v191 = vpack.c.b16 %v187, %v187
    %v192 = vpack.c.b16 %v188, %v188
    %v193 = vpack.c.b16 %v189, %v189
    %vm198 = vcmask 519168
    %199 = vst.msk [vmem:[#allocation7] sm:$0xf] %vm198, %v190
    %200 = vst.msk [vmem:[#allocation7 + $0x4] sm:$0xf] %vm198, %v191
    %201 = vst.msk [vmem:[#allocation7 + $0x8] sm:$0xf] %vm198, %v192
    %202 = vst.msk [vmem:[#allocation7 + $0xc] sm:$0xf] %vm198, %v193
    %203 = vrot.lane.b32.xlu0 %v190, 64
    %v204 = vpop.permute.xlu0 %203
    %205 = vrot.lane.b32.xlu0 %v191, 64
    %v206 = vpop.permute.xlu0 %205
    %207 = vrot.lane.b32.xlu0 %v192, 64
    %v208 = vpop.permute.xlu0 %207
    %209 = vrot.lane.b32.xlu0 %v193, 64
    %v210 = vpop.permute.xlu0 %209
    %215 = vst.msk [vmem:[#allocation8] sm:$0xf] %vm198, %v204
    %216 = vst.msk [vmem:[#allocation8 + $0x4] sm:$0xf] %vm198, %v206
    %217 = vst.msk [vmem:[#allocation8 + $0x8] sm:$0xf] %vm198, %v208
    %218 = vst.msk [vmem:[#allocation8 + $0xc] sm:$0xf] %vm198, %v210
    %v219 = vpack.c.bf16 %v170, %v166
    %v220 = vpack.c.bf16 %v180, %v176
    %v223 = vunpack.c.l.b16 %v219
    %v224 = vunpack.c.h.b16 %v219
    %v225 = vunpack.c.l.b16 %v220
    %v226 = vunpack.c.h.b16 %v220
    %v227 = vpack.c.b16 %v223, %v223
    %v228 = vpack.c.b16 %v224, %v224
    %v229 = vpack.c.b16 %v225, %v225
    %v230 = vpack.c.b16 %v226, %v226
    %235 = vst.msk [vmem:[#allocation10] sm:$0xf] %vm198, %v227
    %236 = vst.msk [vmem:[#allocation10 + $0x4] sm:$0xf] %vm198, %v228
    %237 = vst.msk [vmem:[#allocation10 + $0x8] sm:$0xf] %vm198, %v229
    %238 = vst.msk [vmem:[#allocation10 + $0xc] sm:$0xf] %vm198, %v230
    // Predicated region
    $region22: #{tpu_custom_call.1} parent=1 // pred_check
      _
    $region23: #{tpu_custom_call.1} parent=1 // pred_check_branch
      %240 = sbr.rel (0) target = $region25
    $region24: #{tpu_custom_call.1} parent=1 // pred_region
      %s242 = ssub.s32 256, 256
      %243 = vsyncadd [#allocation4], %s242
      %s244 = sshll.u32 [#allocation7], 4
      %s245 = int_to_ptr.vmem [resolvable:$true] %s244
      %250 = dma.vmem_to_hbm [thread:$0]  %s245, 256, %s3, [#allocation4], 64, 64, 4
    $region25: #{tpu_custom_call.1} parent=1 // pred_fallthru
      _
    // Predicated region
    $region26: #{tpu_custom_call.1} parent=1 // pred_check
      _
    $region27: #{tpu_custom_call.1} parent=1 // pred_check_branch
      %252 = sbr.rel (0) target = $region29
    $region28: #{tpu_custom_call.1} parent=1 // pred_region
      %s254 = ssub.s32 256, 256
      %255 = vsyncadd [#allocation9], %s254
      %s256 = sshll.u32 [#allocation8], 4
      %s257 = int_to_ptr.vmem [resolvable:$true] %s256
      %262 = dma.vmem_to_hbm [thread:$0]  %s257, 256, %s4, [#allocation9], 64, 64, 4
    $region29: #{tpu_custom_call.1} parent=1 // pred_fallthru
      _
    // Predicated region
    $region30: #{tpu_custom_call.1} parent=1 // pred_check
      _
    $region31: #{tpu_custom_call.1} parent=1 // pred_check_branch
      %264 = sbr.rel (0) target = $region33
    $region32: #{tpu_custom_call.1} parent=1 // pred_region
      %s266 = ssub.s32 256, 256
      %267 = vsyncadd [#allocation9], %s266
      %s268 = sshll.u32 [#allocation10], 4
      %s269 = int_to_ptr.vmem [resolvable:$true] %s268
      %274 = dma.vmem_to_hbm [thread:$0]  %s269, 256, %s5, [#allocation9], 64, 64, 4
    $region33: #{tpu_custom_call.1} parent=1 // pred_fallthru
      _
    // Predicated region
    $region34: #{tpu_custom_call.1} parent=1 // pred_check
      _
    $region35: #{tpu_custom_call.1} parent=1 // pred_check_branch
      %276 = sbr.rel (0) target = $region37
    $region36: #{tpu_custom_call.1} parent=1 // pred_region
      %277 = dma.done [#allocation4], 256
    $region37: #{tpu_custom_call.1} parent=1 // pred_fallthru
      _
    // Predicated region
    $region38: #{tpu_custom_call.1} parent=1 // pred_check
      _
    $region39: #{tpu_custom_call.1} parent=1 // pred_check_branch
      %279 = sbr.rel (0) target = $region41
    $region40: #{tpu_custom_call.1} parent=1 // pred_region
      %280 = dma.done [#allocation9], 256
    $region41: #{tpu_custom_call.1} parent=1 // pred_fallthru
      _
    // Predicated region
    $region42: #{tpu_custom_call.1} parent=1 // pred_check
      _
    $region43: #{tpu_custom_call.1} parent=1 // pred_check_branch
      %282 = sbr.rel (0) target = $region45
    $region44: #{tpu_custom_call.1} parent=1 // pred_region
      %283 = dma.done [#allocation9], 256
    $region45: #{tpu_custom_call.1} parent=1 // pred_fallthru
      _
    %284 = vsyncpa [#allocation3], 1
    %285 = vsyncpa [#allocation6], 1
    %286 = vsyncpa [#allocation4], 1
    %287 = vsyncpa [#allocation9], 1

</llo_original>
